<compile_context>
chip_gen: v7x
topology: tpu7x:2x2x1
jax: 0.10.0
libtpu: 0.0.40
codegen_flags: <defaults>
</compile_context>

<pallas_src>
import functools

import jax
import jax.numpy as jnp
from jax.experimental import pallas as pl
from jax.experimental.pallas import tpu as pltpu

LANES = 128
ROW_TILE = 4096        # (4096, 128) f32 block = 2 MiB
SMALL_ROWS = 4096      # slabs <= 2 MiB run as a single block (grid of 1)


def _dropout_kernel(seed_ref, x_ref, o_ref, *, p, row_tile):
    shape = x_ref.shape

    # Global element index of every element in this block (tiling-invariant).
    row0 = (pl.program_id(0) * row_tile).astype(jnp.uint32)
    row_iota = jax.lax.broadcasted_iota(jnp.uint32, shape, 0)
    lane_iota = jax.lax.broadcasted_iota(jnp.uint32, shape, 1)
    idx = (row_iota + row0) * jnp.uint32(LANES) + lane_iota

    # Counter-based hash: mix in the seed, then murmur3 fmix32 avalanche.
    h = idx ^ seed_ref[0].astype(jnp.uint32)
    h = h * jnp.uint32(0x9E3779B1)
    h = h ^ (h >> 16)
    h = h * jnp.uint32(0x85EBCA6B)
    h = h ^ (h >> 13)
    h = h * jnp.uint32(0xC2B2AE35)
    h = h ^ (h >> 16)

    # keep with prob (1 - p): top-24 bits >= p * 2^24 (fits in int32, so the
    # compare is signed-safe; no float-uniform construction needed).
    u24 = (h >> 8).astype(jnp.int32)
    threshold = jnp.int32(int(p * (1 << 24)))
    keep = u24 >= threshold

    scale = jnp.float32(1.0 / (1.0 - p))
    o_ref[...] = jnp.where(keep, x_ref[...] * scale, jnp.float32(0.0))


def dropout_forward(x, p=0.5, training=True, seed=0):
    """Dropout forward matching torch: keep w.p. (1-p), scale kept by 1/(1-p)."""
    if not training or p == 0.0:
        return x
    assert 0.0 <= p < 1.0, "p must be in [0, 1) in training mode"

    orig_shape = x.shape
    orig_dtype = x.dtype
    total = x.size

    flat = x.reshape(-1).astype(jnp.float32)
    rows = -(-total // LANES)
    if rows * LANES != total:
        flat = jnp.pad(flat, (0, rows * LANES - total))

    if rows <= SMALL_ROWS:
        row_tile = rows               # single full-array block, grid of 1
        n_blocks = 1
    else:
        row_tile = ROW_TILE           # 2 MiB blocks for large inputs
        n_blocks = -(-rows // row_tile)
        padded_rows = n_blocks * row_tile
        if padded_rows != rows:
            flat = jnp.pad(flat, (0, (padded_rows - rows) * LANES))
            rows = padded_rows

    x2d = flat.reshape(rows, LANES)
    seed_arr = jnp.array([seed], dtype=jnp.int32)

    kernel = functools.partial(_dropout_kernel, p=float(p), row_tile=row_tile)
    out2d = pl.pallas_call(
        kernel,
        out_shape=jax.ShapeDtypeStruct((rows, LANES), jnp.float32),
        grid_spec=pltpu.PrefetchScalarGridSpec(
            num_scalar_prefetch=1,
            grid=(n_blocks,),
            in_specs=[pl.BlockSpec((row_tile, LANES), lambda i, seed: (i, 0))],
            out_specs=pl.BlockSpec((row_tile, LANES), lambda i, seed: (i, 0)),
        ),
        compiler_params=pltpu.CompilerParams(
            # Mask depends only on the global element index, so grid steps are
            # order-independent -> safe to shard across v7x's two TensorCores.
            dimension_semantics=("parallel",),
            # 2 MiB blocks x 2 arrays x 2 buffers = 8 MiB in flight; 32 MiB
            # leaves headroom everywhere and stays well under v7x's 64 MiB
            # physical VMEM.
            vmem_limit_bytes=32 * 1024 * 1024,
        ),
    )(seed_arr, x2d)

    return out2d.reshape(-1)[:total].reshape(orig_shape).astype(orig_dtype)


if __name__ == "__main__":
    key = jax.random.PRNGKey(0)
    # Small NCHW-style input: batch=2, channels=4, spatial=16x16.
    x = jax.random.normal(key, (2, 4, 16, 16), dtype=jnp.float32)

    p = 0.5
    out = jax.block_until_ready(dropout_forward(x, p=p, training=True, seed=1234))

    assert out.shape == x.shape and out.dtype == x.dtype
    # Surviving elements are exactly x / (1 - p); the rest are zero.
    nz = out != 0.0
    assert bool(jnp.allclose(out[nz], (x / (1.0 - p))[nz], rtol=1e-6, atol=1e-6))
    # Keep fraction should be roughly (1 - p).
    keep_frac = float(jnp.mean(nz.astype(jnp.float32)))
    assert abs(keep_frac - (1.0 - p)) < 0.1, keep_frac

    # Eval mode is identity.
    out_eval = jax.block_until_ready(dropout_forward(x, p=p, training=False))
    assert bool(jnp.array_equal(out_eval, x))

    print("KERNEL_OK")
</pallas_src>

<mosaic_0001>
module attributes {stable_mosaic.version = 11 : i64} {
  func.func @_dropout_kernel(%arg0: i32, %arg1: memref<1xi32, #tpu.memory_space<smem>>, %arg2: memref<16x128xf32, #tpu.memory_space<vmem>>, %arg3: memref<16x128xf32, #tpu.memory_space<vmem>>) attributes {dimension_semantics = [#tpu.dimension_semantics<parallel>], iteration_bounds = array<i64: 1>, scalar_prefetch = 1 : i64, scratch_operands = 0 : i64, tpu.core_type = #tpu.core_type<tc>, window_params = [{transform_indices = @transform_0, window_bounds = array<i64: 16, 128>}, {transform_indices = @transform_1, window_bounds = array<i64: 16, 128>}]} {
    %c16_i32 = arith.constant 16 : i32
    %0 = arith.muli %arg0, %c16_i32 : i32
    %1 = tpu.iota {dimensions = array<i32: 0>} : vector<16x128xi32>
    %2 = tpu.iota {dimensions = array<i32: 1>} : vector<16x128xi32>
    %3 = vector.broadcast %0 : i32 to vector<16x128xi32>
    %4 = arith.addi %1, %3 : vector<16x128xi32>
    %c128_i32 = arith.constant 128 : i32
    %5 = vector.broadcast %c128_i32 : i32 to vector<16x128xi32>
    %6 = arith.muli %4, %5 : vector<16x128xi32>
    %7 = arith.addi %6, %2 : vector<16x128xi32>
    %c0 = arith.constant 0 : index
    %8 = memref.load %arg1[%c0] : memref<1xi32, #tpu.memory_space<smem>>
    %9 = vector.broadcast %8 : i32 to vector<16x128xi32>
    %10 = arith.xori %7, %9 : vector<16x128xi32>
    %c-1640531535_i32 = arith.constant -1640531535 : i32
    %11 = vector.broadcast %c-1640531535_i32 : i32 to vector<16x128xi32>
    %12 = arith.muli %10, %11 : vector<16x128xi32>
    %c16_i32_0 = arith.constant 16 : i32
    %13 = vector.broadcast %c16_i32_0 : i32 to vector<16x128xi32>
    %14 = arith.shrui %12, %13 : vector<16x128xi32>
    %15 = arith.xori %12, %14 : vector<16x128xi32>
    %c-2048144789_i32 = arith.constant -2048144789 : i32
    %16 = vector.broadcast %c-2048144789_i32 : i32 to vector<16x128xi32>
    %17 = arith.muli %15, %16 : vector<16x128xi32>
    %c13_i32 = arith.constant 13 : i32
    %18 = vector.broadcast %c13_i32 : i32 to vector<16x128xi32>
    %19 = arith.shrui %17, %18 : vector<16x128xi32>
    %20 = arith.xori %17, %19 : vector<16x128xi32>
    %c-1028477387_i32 = arith.constant -1028477387 : i32
    %21 = vector.broadcast %c-1028477387_i32 : i32 to vector<16x128xi32>
    %22 = arith.muli %20, %21 : vector<16x128xi32>
    %c16_i32_1 = arith.constant 16 : i32
    %23 = vector.broadcast %c16_i32_1 : i32 to vector<16x128xi32>
    %24 = arith.shrui %22, %23 : vector<16x128xi32>
    %25 = arith.xori %22, %24 : vector<16x128xi32>
    %c8_i32 = arith.constant 8 : i32
    %26 = vector.broadcast %c8_i32 : i32 to vector<16x128xi32>
    %27 = arith.shrui %25, %26 : vector<16x128xi32>
    %c8388608_i32 = arith.constant 8388608 : i32
    %28 = vector.broadcast %c8388608_i32 : i32 to vector<16x128xi32>
    %29 = arith.cmpi sge, %27, %28 : vector<16x128xi32>
    %c0_2 = arith.constant 0 : index
    %c0_3 = arith.constant 0 : index
    %30 = vector.load %arg2[%c0_2, %c0_3] : memref<16x128xf32, #tpu.memory_space<vmem>>, vector<16x128xf32>
    %cst = arith.constant 2.000000e+00 : f32
    %31 = vector.broadcast %cst : f32 to vector<16x128xf32>
    %32 = arith.mulf %30, %31 : vector<16x128xf32>
    %cst_4 = arith.constant 0.000000e+00 : f32
    %33 = vector.broadcast %cst_4 : f32 to vector<16x128xf32>
    %34 = arith.select %29, %32, %33 : vector<16x128xi1>, vector<16x128xf32>
    %c0_5 = arith.constant 0 : index
    %c0_6 = arith.constant 0 : index
    %35 = vector.load %arg3[%c0_5, %c0_6] : memref<16x128xf32, #tpu.memory_space<vmem>>, vector<16x128xf32>
    tpu.vector_store %arg3[%c0_5, %c0_6], %34 {strides = array<i32>} : memref<16x128xf32, #tpu.memory_space<vmem>>, vector<16x128xf32>,
    return
  }
  func.func @transform_0(%arg0: i32, %arg1: memref<1xi32, #tpu.memory_space<smem>>) -> (i32, i32) {
    %c0_i32 = arith.constant 0 : i32
    %c0_i32_0 = arith.constant 0 : i32
    return %arg0, %c0_i32 : i32, i32
  }
  func.func @transform_1(%arg0: i32, %arg1: memref<1xi32, #tpu.memory_space<smem>>) -> (i32, i32) {
    %c0_i32 = arith.constant 0 : i32
    %c0_i32_0 = arith.constant 0 : i32
    return %arg0, %c0_i32 : i32, i32
  }
}

</mosaic_0001>

<llo_original>
// kernel: tpu_custom_call.1
$region0: #{tpu_custom_call.1}
  #allocation0 [shape = 'u32[]', space=smem, size = 0x4, offset = 0x4, fixed_abs, tag = 'smem constant byte address 0x4 - core index']
  #allocation1 [shape = 'u32[144,128]{1,0:T(1,128)}', space=vmem, size = 0x12000, scoped, tag = 'internal scratch']
  #allocation2 [shape = 's32[1]{0}', space=sflag, size = 0x4, scoped, tag = 'scoped memory for tpu_custom_call.1']
  #allocation3 [shape = 's32[1]{0:T(128)S(6)}', space=smem, size = 0x200, scoped, tag = 'prefetched SMEM operand 0']
  %s0 = inlined_call_operand.<no memory space> [shape: s32[1], index: 0, kind: input, shape index: {}]
  %s1 = inlined_call_operand.hbm [shape: f32[16,128], index: 1, kind: input, shape index: {}]
  %s2 = inlined_call_operand.hbm [shape: f32[16,128], index: 2, kind: output, shape index: {}]
  %s3 = sld [smem:[#allocation0]]
  $region18: #{tpu_custom_call.1} parent=0
    _
  %s5 = ssub.s32 1, %s3
  %s6 = scalar_select 0, %s5, %s3
  %7 = sst [smem:[#allocation3]] %s0
  $region1: #{tpu_custom_call.1} parent=0
    #allocation4 [shape = 'u8[8192]{0}', space=vmem, size = 0x2000, scoped, tag = 'input window, operand 1, single buffered']
    #allocation5 [shape = 's32[1]{0}', space=sflag, size = 0x4, scoped, tag = 'scoped memory for tpu_custom_call.1']
    #allocation6 [shape = 's32[1]{0}', space=sflag, size = 0x4, scoped, tag = 'scoped memory for tpu_custom_call.1']
    #allocation7 [shape = 'u8[8192]{0}', space=vmem, size = 0x2000, scoped, tag = 'output window, operand 0, single buffered']
    %8 = vsyncpa [#allocation5], 0
    %9 = vsyncpa [#allocation6], 0
    // Predicated region
    $region2: #{tpu_custom_call.1} parent=1 // pred_check
      _
    $region3: #{tpu_custom_call.1} parent=1 // pred_check_branch
      %11 = sbr.rel (0) target = $region5
    $region4: #{tpu_custom_call.1} parent=1 // pred_region
      %s13 = ssub.s32 256, 256
      %14 = vsyncadd [#allocation5], %s13
      %s15 = sshll.u32 [#allocation4], 4
      %s16 = int_to_ptr.vmem [resolvable:$true] %s15
      %21 = dma.hbm_to_vmem [thread:$0]  %s1, 256, %s16, [#allocation5], 128, 128, 8
    $region5: #{tpu_custom_call.1} parent=1 // pred_fallthru
      _
    // Predicated region
    $region6: #{tpu_custom_call.1} parent=1 // pred_check
      _
    $region7: #{tpu_custom_call.1} parent=1 // pred_check_branch
      %23 = sbr.rel (0) target = $region9
    $region8: #{tpu_custom_call.1} parent=1 // pred_region
      %24 = dma.done [#allocation5], 256
    $region9: #{tpu_custom_call.1} parent=1 // pred_fallthru
      _
    %s25 = smul.u32 0, 16
    %v26 = vlaneseq
    %v27 = vshrl.u32 %v26, 7
    %v28 = vadd.s32 %v27, 8
    %v29 = vlaneseq
    %v30 = vand.u32 %v29, 127
    %v31 = vstv %s25
    %v32 = vadd.s32 %v27, %v31
    %v33 = vadd.s32 %v28, %v31
    %v34 = vmul.u32 %v32, 128
    %v35 = vmul.u32 %v33, 128
    %v36 = vadd.s32 %v34, %v30
    %v37 = vadd.s32 %v35, %v30
    %s38 = sld [smem:[#allocation3]]
    %v39 = vstv %s38
    %v40 = vxor.u32 %v36, %v39
    %v41 = vxor.u32 %v37, %v39
    %v42 = vmul.u32 %v40, 2654435761
    %v43 = vmul.u32 %v41, 2654435761
    %v44 = vshrl.u32 %v42, 16
    %v45 = vshrl.u32 %v43, 16
    %v46 = vxor.u32 %v42, %v44
    %v47 = vxor.u32 %v43, %v45
    %v48 = vmul.u32 %v46, 2246822507
    %v49 = vmul.u32 %v47, 2246822507
    %v50 = vshrl.u32 %v48, 13
    %v51 = vshrl.u32 %v49, 13
    %v52 = vxor.u32 %v48, %v50
    %v53 = vxor.u32 %v49, %v51
    %v54 = vmul.u32 %v52, 3266489909
    %v55 = vmul.u32 %v53, 3266489909
    %v56 = vshrl.u32 %v54, 16
    %v57 = vshrl.u32 %v55, 16
    %v58 = vxor.u32 %v54, %v56
    %v59 = vxor.u32 %v55, %v57
    %v60 = vshrl.u32 %v58, 8
    %v61 = vshrl.u32 %v59, 8
    %vm62 = vcmp.ge.s32.totalorder %v60, 8388608
    %vm63 = vcmp.ge.s32.totalorder %v61, 8388608
    %v64 = vld [vmem:[#allocation4] sm:$0xff]
    %v65 = vld [vmem:[#allocation4 + $0x8] sm:$0xff]
    %v66 = vmul.f32 %v64, 2.0
    %v67 = vmul.f32 %v65, 2.0
    %v68 = vsel %vm62, %v66, 0.0
    %v69 = vsel %vm63, %v67, 0.0
    %70 = vst [vmem:[#allocation7] sm:$0xff] %v68
    %71 = vst [vmem:[#allocation7 + $0x8] sm:$0xff] %v69
    // Predicated region
    $region10: #{tpu_custom_call.1} parent=1 // pred_check
      _
    $region11: #{tpu_custom_call.1} parent=1 // pred_check_branch
      %73 = sbr.rel (0) target = $region13
    $region12: #{tpu_custom_call.1} parent=1 // pred_region
      %s75 = ssub.s32 256, 256
      %76 = vsyncadd [#allocation6], %s75
      %s77 = sshll.u32 [#allocation7], 4
      %s78 = int_to_ptr.vmem [resolvable:$true] %s77
      %83 = dma.vmem_to_hbm [thread:$0]  %s78, 256, %s2, [#allocation6], 128, 128, 8
    $region13: #{tpu_custom_call.1} parent=1 // pred_fallthru
      _
    // Predicated region
    $region14: #{tpu_custom_call.1} parent=1 // pred_check
      _
    $region15: #{tpu_custom_call.1} parent=1 // pred_check_branch
      %85 = sbr.rel (0) target = $region17
    $region16: #{tpu_custom_call.1} parent=1 // pred_region
      %86 = dma.done [#allocation6], 256
    $region17: #{tpu_custom_call.1} parent=1 // pred_fallthru
      _
    %87 = vsyncpa [#allocation5], 1
    %88 = vsyncpa [#allocation6], 1

</llo_original>
